<compile_context>
chip_gen: v5e
topology: v5e:2x2
jax: 0.10.0
libtpu: 0.0.40
codegen_flags: <defaults>
</compile_context>

<pallas_src>
import functools

import jax
import jax.numpy as jnp
from jax import lax
from jax.experimental import pallas as pl
from jax.experimental.pallas import tpu as pltpu


def _round_up(x, m):
    return (x + m - 1) // m * m


def decoder_kernel(x_ref, w_ref, b_ref, o_ref, *, tm, x_resident):
    # x_ref: (tm, ninp) streamed, or (m_pad, ninp) when resident
    # w_ref: (tn, ninp)  -- native nn.Linear layout (ntoken, ninp) tiled on rows
    # b_ref: (1, tn) f32
    # o_ref: (tm, tn)
    if x_resident:
        i = pl.program_id(1)
        rows = x_ref[pl.ds(pl.multiple_of(i * tm, tm), tm), :]
    else:
        rows = x_ref[...]
    acc = lax.dot_general(
        rows, w_ref[...],
        dimension_numbers=(((1,), (1,)), ((), ())),
        preferred_element_type=jnp.float32,
    )
    o_ref[...] = (acc + b_ref[...]).astype(o_ref.dtype)


def decoder_forward(x, weight, bias, *, tm=256, tn=512,
                    compute_dtype=jnp.bfloat16,
                    vmem_budget_bytes=40 * 1024 * 1024):
    """Decoder forward: self.decoder(inp).permute(1, 0, 2).

    x: (S, B, ninp); weight: (ntoken, ninp); bias: (ntoken,).
    Returns (B, S, ntoken) in x.dtype.
    """
    S, B, ninp = x.shape
    ntoken, ninp_w = weight.shape
    assert ninp_w == ninp
    M = B * S
    out_dtype = x.dtype
    out_bytes = jnp.dtype(out_dtype).itemsize
    cdt = jnp.dtype(compute_dtype) if compute_dtype is not None else jnp.dtype(x.dtype)
    c_bytes = cdt.itemsize

    # Fuse the output permute by transposing the (small) input once: the
    # (M, ntoken) result is then already batch-major.
    x2 = jnp.transpose(x, (1, 0, 2)).reshape(M, ninp).astype(cdt)
    w2 = weight.astype(cdt)                      # native layout: no transpose, no pad
    b2 = bias.reshape(1, ntoken).astype(jnp.float32)

    # ---- tile-size selection -----------------------------------------------
    # N tile: lane-dense multiple of 128 (or the full ntoken when it is small).
    if ntoken >= 128:
        tn = max(128, min(tn, (ntoken // 128) * 128))
    else:
        tn = ntoken
    # M tile: the full M when it fits in one tile (no padding, no masking),
    # otherwise a multiple of 8.
    if M <= tm:
        tm = M
    else:
        tm = _round_up(min(tm, M), 8)

    def working_set(tm_, tn_, resident_):
        m_pad_ = _round_up(M, tm_)
        x_rows = m_pad_ if resident_ else tm_
        return 2 * (x_rows * ninp * c_bytes          # x buffers
                    + tn_ * ninp * c_bytes           # weight tile buffers
                    + tn_ * 4                        # bias tile buffers
                    + tm_ * tn_ * out_bytes)         # output tile buffers

    # Keep the whole activation resident when it fits the budget.
    x_resident = M > tm
    while working_set(tm, tn, x_resident) > vmem_budget_bytes:
        if x_resident:
            x_resident = False
        elif tn > 128:
            tn = max(128, (tn // 2 // 128) * 128)
        elif tm > 8:
            tm = max(8, _round_up(tm // 2, 8))
        else:
            break

    m_pad = _round_up(M, tm)
    if m_pad != M:
        # Cheap: only the (small) activation is padded; weight/output are not.
        x2 = jnp.pad(x2, ((0, m_pad - M), (0, 0)))

    # N outer, M inner: each weight tile is fetched from HBM exactly once and
    # stays resident while the activation tiles stream (or sit resident).
    grid = (pl.cdiv(ntoken, tn), m_pad // tm)

    if x_resident:
        x_spec = pl.BlockSpec((m_pad, ninp), lambda j, i: (0, 0))
    else:
        x_spec = pl.BlockSpec((tm, ninp), lambda j, i: (i, 0))

    kernel = functools.partial(decoder_kernel, tm=tm, x_resident=x_resident)

    est = working_set(tm, tn, x_resident)
    compiler_kwargs = dict(dimension_semantics=("parallel", "arbitrary"))
    if est > 12 * 1024 * 1024:
        # Raise the scoped-VMEM limit (16/32 MiB defaults) with headroom while
        # staying well under v7x's 64 MiB physical VMEM.
        compiler_kwargs["vmem_limit_bytes"] = min(48 * 1024 * 1024,
                                                  int(est * 1.25) + (4 << 20))

    x_read_once = x_resident or (m_pad == tm)
    cost = pl.CostEstimate(
        flops=2 * M * ntoken * ninp,
        transcendentals=0,
        bytes_accessed=(m_pad * ninp * c_bytes if x_read_once
                        else grid[0] * m_pad * ninp * c_bytes)
                       + ntoken * ninp * c_bytes      # weight streamed once
                       + ntoken * 4                   # bias
                       + M * ntoken * out_bytes,      # output write
    )

    y = pl.pallas_call(
        kernel,
        out_shape=jax.ShapeDtypeStruct((M, ntoken), out_dtype),
        grid=grid,
        in_specs=[
            x_spec,
            pl.BlockSpec((tn, ninp), lambda j, i: (j, 0)),
            pl.BlockSpec((1, tn), lambda j, i: (0, j)),
        ],
        out_specs=pl.BlockSpec((tm, tn), lambda j, i: (i, j)),
        compiler_params=pltpu.CompilerParams(**compiler_kwargs),
        cost_estimate=cost,
    )(x2, w2, b2)

    return y.reshape(B, S, ntoken)


if __name__ == "__main__":
    # Small shapes consistent with the module: seq=8, batch=2, ninp=32, ntoken=16
    S, B, NINP, NTOKEN = 8, 2, 32, 16

    key = jax.random.PRNGKey(0)
    k_x, k_w = jax.random.split(key)

    # Deterministic parameter init mirroring Decoder.init_weights():
    #   weight ~ U(-0.1, 0.1), bias = 0
    weight = jax.random.uniform(
        k_w, (NTOKEN, NINP), dtype=jnp.float32, minval=-0.1, maxval=0.1
    )
    bias = jnp.zeros((NTOKEN,), dtype=jnp.float32)
    x = jax.random.normal(k_x, (S, B, NINP), dtype=jnp.float32)

    out = jax.block_until_ready(decoder_forward(x, weight, bias))

    # Reference (f32): same semantics as nn.Linear + permute(1, 0, 2).
    ref = jnp.transpose(jnp.einsum("sbi,ti->sbt", x, weight) + bias, (1, 0, 2))
    assert out.shape == (B, S, NTOKEN), out.shape
    assert out.dtype == x.dtype, out.dtype
    # Kernel uses bf16 MXU tiles with f32 accumulation -> loosened tolerance.
    max_err = float(jnp.max(jnp.abs(out - ref)))
    assert jnp.allclose(out, ref, atol=2e-2, rtol=2e-2), max_err

    print("KERNEL_OK")
</pallas_src>

<mosaic_0001>
module attributes {stable_mosaic.version = 11 : i64} {
  func.func @decoder_kernel(%arg0: i32, %arg1: i32, %arg2: memref<16x32xbf16, #tpu.memory_space<vmem>>, %arg3: memref<16x32xbf16, #tpu.memory_space<vmem>>, %arg4: memref<1x16xf32, #tpu.memory_space<vmem>>, %arg5: memref<16x16xf32, #tpu.memory_space<vmem>>) attributes {dimension_semantics = [#tpu.dimension_semantics<parallel>, #tpu.dimension_semantics<arbitrary>], iteration_bounds = array<i64: 1, 1>, scalar_prefetch = 0 : i64, scratch_operands = 0 : i64, tpu.core_type = #tpu.core_type<tc>, window_params = [{transform_indices = @transform_0, window_bounds = array<i64: 16, 32>}, {transform_indices = @transform_1, window_bounds = array<i64: 16, 32>}, {transform_indices = @transform_2, window_bounds = array<i64: 1, 16>}, {transform_indices = @transform_3, window_bounds = array<i64: 16, 16>}]} {
    %c0 = arith.constant 0 : index
    %c0_0 = arith.constant 0 : index
    %0 = vector.load %arg2[%c0, %c0_0] : memref<16x32xbf16, #tpu.memory_space<vmem>>, vector<16x32xbf16>
    %c0_1 = arith.constant 0 : index
    %c0_2 = arith.constant 0 : index
    %1 = vector.load %arg3[%c0_1, %c0_2] : memref<16x32xbf16, #tpu.memory_space<vmem>>, vector<16x32xbf16>
    %cst = arith.constant dense<0.000000e+00> : vector<16x16xf32>
    %2 = tpu.matmul %0, %1, %cst {dimension_numbers = #tpu.dot_dimension_numbers<[1], [1], [0], [0], [0, 0, 1, 0], [], []>} : vector<16x32xbf16>, vector<16x32xbf16>, vector<16x16xf32> -> vector<16x16xf32>
    %c0_3 = arith.constant 0 : index
    %c0_4 = arith.constant 0 : index
    %3 = vector.load %arg4[%c0_3, %c0_4] : memref<1x16xf32, #tpu.memory_space<vmem>>, vector<1x16xf32>
    %4 = vector.broadcast %3 : vector<1x16xf32> to vector<16x16xf32>
    %5 = arith.addf %2, %4 : vector<16x16xf32>
    %c0_5 = arith.constant 0 : index
    %c0_6 = arith.constant 0 : index
    %6 = vector.load %arg5[%c0_5, %c0_6] : memref<16x16xf32, #tpu.memory_space<vmem>>, vector<16x16xf32>
    tpu.vector_store %arg5[%c0_5, %c0_6], %5 {strides = array<i32>} : memref<16x16xf32, #tpu.memory_space<vmem>>, vector<16x16xf32>,
    return
  }
  func.func @transform_0(%arg0: i32, %arg1: i32) -> (i32, i32) {
    %c0_i32 = arith.constant 0 : i32
    %c0_i32_0 = arith.constant 0 : i32
    return %arg1, %c0_i32 : i32, i32
  }
  func.func @transform_1(%arg0: i32, %arg1: i32) -> (i32, i32) {
    %c0_i32 = arith.constant 0 : i32
    %c0_i32_0 = arith.constant 0 : i32
    return %arg0, %c0_i32 : i32, i32
  }
  func.func @transform_2(%arg0: i32, %arg1: i32) -> (i32, i32) {
    %c0_i32 = arith.constant 0 : i32
    %c0_i32_0 = arith.constant 0 : i32
    return %c0_i32, %arg0 : i32, i32
  }
  func.func @transform_3(%arg0: i32, %arg1: i32) -> (i32, i32) {
    %c0_i32 = arith.constant 0 : i32
    return %arg1, %arg0 : i32, i32
  }
}

</mosaic_0001>

<llo_original>
// kernel: tpu_custom_call.1
$region0: #{tpu_custom_call.1}
  #allocation0 [shape = 'u32[]', space=smem, size = 0x4, offset = 0x4, fixed_abs, tag = 'smem constant byte address 0x4 - core index']
  #allocation1 [shape = 'u32[72,128]{1,0:T(1,128)}', space=vmem, size = 0x9000, scoped, tag = 'internal scratch']
  %s0 = inlined_call_operand.hbm [shape: bf16[16,32], index: 0, kind: input, shape index: {}]
  %s1 = inlined_call_operand.hbm [shape: bf16[16,32], index: 1, kind: input, shape index: {}]
  %s2 = inlined_call_operand.vmem [shape: f32[1,16], index: 2, kind: input, shape index: {}]
  %s3 = inlined_call_operand.hbm [shape: f32[16,16], index: 3, kind: output, shape index: {}]
  %s4 = sld [smem:[#allocation0]]
  $region30: #{tpu_custom_call.1} parent=0
    _
  %s6 = ssub.s32 1, %s4
  %s7 = scalar_select 0, %s6, %s4
  $region1: #{tpu_custom_call.1} parent=0
    #allocation2 [shape = 'u8[4096]{0}', space=vmem, size = 0x1000, scoped, tag = 'input window, operand 0, single buffered']
    #allocation3 [shape = 's32[1]{0}', space=sflag, size = 0x4, scoped, tag = 'scoped memory for tpu_custom_call.1']
    #allocation4 [shape = 's32[1]{0}', space=sflag, size = 0x4, scoped, tag = 'scoped memory for tpu_custom_call.1']
    #allocation5 [shape = 'u8[4096]{0}', space=vmem, size = 0x1000, scoped, tag = 'input window, operand 1, single buffered']
    #allocation6 [shape = 's32[1]{0}', space=sflag, size = 0x4, scoped, tag = 'scoped memory for tpu_custom_call.1']
    #allocation7 [shape = 'u8[8192]{0}', space=vmem, size = 0x2000, scoped, tag = 'output window, operand 0, single buffered']
    %8 = vsyncpa [#allocation3], 0
    %9 = vsyncpa [#allocation6], 0
    %10 = vsyncpa [#allocation4], 0
    // Predicated region
    $region2: #{tpu_custom_call.1} parent=1 // pred_check
      _
    $region3: #{tpu_custom_call.1} parent=1 // pred_check_branch
      %12 = sbr.rel (0) target = $region5
    $region4: #{tpu_custom_call.1} parent=1 // pred_region
      %14 = vsyncadd [#allocation3], 0
      %s15 = sshll.u32 %s0, 4
      %s16 = int_to_ptr.hbm [resolvable:$true] %s15
      %s17 = sshll.u32 [#allocation2], 4
      %s18 = int_to_ptr.vmem [resolvable:$true] %s17
      %23 = dma.hbm_to_vmem [thread:$0]  %s16, 128, %s18, [#allocation3], 64, 64, 4
    $region5: #{tpu_custom_call.1} parent=1 // pred_fallthru
      _
    // Predicated region
    $region6: #{tpu_custom_call.1} parent=1 // pred_check
      _
    $region7: #{tpu_custom_call.1} parent=1 // pred_check_branch
      %25 = sbr.rel (0) target = $region9
    $region8: #{tpu_custom_call.1} parent=1 // pred_region
      %27 = vsyncadd [#allocation6], 0
      %s28 = sshll.u32 %s1, 4
      %s29 = int_to_ptr.hbm [resolvable:$true] %s28
      %s30 = sshll.u32 [#allocation5], 4
      %s31 = int_to_ptr.vmem [resolvable:$true] %s30
      %36 = dma.hbm_to_vmem [thread:$0]  %s29, 128, %s31, [#allocation6], 64, 64, 4
    $region9: #{tpu_custom_call.1} parent=1 // pred_fallthru
      _
    // Predicated region
    $region10: #{tpu_custom_call.1} parent=1 // pred_check
      _
    $region11: #{tpu_custom_call.1} parent=1 // pred_check_branch
      %38 = sbr.rel (0) target = $region13
    $region12: #{tpu_custom_call.1} parent=1 // pred_region
      _
    $region13: #{tpu_custom_call.1} parent=1 // pred_fallthru
      _
    // Predicated region
    $region14: #{tpu_custom_call.1} parent=1 // pred_check
      _
    $region15: #{tpu_custom_call.1} parent=1 // pred_check_branch
      %40 = sbr.rel (0) target = $region17
    $region16: #{tpu_custom_call.1} parent=1 // pred_region
      %42 = dma.done [#allocation3], 128
    $region17: #{tpu_custom_call.1} parent=1 // pred_fallthru
      _
    // Predicated region
    $region18: #{tpu_custom_call.1} parent=1 // pred_check
      _
    $region19: #{tpu_custom_call.1} parent=1 // pred_check_branch
      %44 = sbr.rel (0) target = $region21
    $region20: #{tpu_custom_call.1} parent=1 // pred_region
      %46 = dma.done [#allocation6], 128
    $region21: #{tpu_custom_call.1} parent=1 // pred_fallthru
      _
    %v48 = vld [vmem:[#allocation2] sm:$0xf]
    %v49 = vld [vmem:[#allocation2 + $0x4] sm:$0xf]
    %v50 = vld [vmem:[#allocation5] sm:$0xf]
    %v51 = vld [vmem:[#allocation5 + $0x4] sm:$0xf]
    %v52 = vld [vmem:[%s2] sm:$0x1]
    %v54 = vperm.slane %v52, 0
    %v58 = vunpack.c.l.b16 %v48
    %v59 = vunpack.c.l.b16 %v49
    %v60 = vpack.c.b16 %v59, %v58
    %v63 = vunpack.c.l.b16 %v50
    %v64 = vunpack.c.l.b16 %v51
    %v65 = vpack.c.b16 %v64, %v63
    %vm66 = vcmask 261120
    %v68 = vsel %vm66, %v60, 0
    %v71 = vsel %vm66, %v65, 0
    %73 = vmatpush.bf16.xpose.msra.mxu0 0
    %74 = vmatpush.bf16.xpose.msra.mxu0 0
    %75 = vmatpush.bf16.xpose.msra.mxu0 0
    %76 = vmatpush.bf16.xpose.msra.mxu0 0
    %77 = vmatpush.bf16.xpose.msra.mxu0 0
    %78 = vmatpush.bf16.xpose.msra.mxu0 0
    %79 = vmatpush.bf16.xpose.msra.mxu0 0
    %80 = vmatpush.bf16.xpose.msra.mxu0 %v71
    %81 = vmatmul.bf16.gmra.mxu0 %v68
    %v82 = vpop.f32.mrf.mxu0
    %v83 = vadd.f32 %v54, %v82
    %v84 = vpop.f32.mrf.mxu0
    %v85 = vadd.f32 %v54, %v84
    %86 = vdwg.mxu0
    %vm87 = vcmask 130048
    %88 = vst.msk [vmem:[#allocation7] sm:$0xff] %vm87, %v83
    %89 = vst.msk [vmem:[#allocation7 + $0x8] sm:$0xff] %vm87, %v85
    // Predicated region
    $region22: #{tpu_custom_call.1} parent=1 // pred_check
      _
    $region23: #{tpu_custom_call.1} parent=1 // pred_check_branch
      %91 = sbr.rel (0) target = $region25
    $region24: #{tpu_custom_call.1} parent=1 // pred_region
      %93 = vsyncadd [#allocation4], 0
      %s94 = sshll.u32 [#allocation7], 4
      %s95 = int_to_ptr.vmem [resolvable:$true] %s94
      %s96 = sshll.u32 %s3, 4
      %s97 = int_to_ptr.hbm [resolvable:$true] %s96
      %102 = dma.vmem_to_hbm [thread:$0]  %s95, 256, %s97, [#allocation4], 128, 128, 8
    $region25: #{tpu_custom_call.1} parent=1 // pred_fallthru
      _
    // Predicated region
    $region26: #{tpu_custom_call.1} parent=1 // pred_check
      _
    $region27: #{tpu_custom_call.1} parent=1 // pred_check_branch
      %104 = sbr.rel (0) target = $region29
    $region28: #{tpu_custom_call.1} parent=1 // pred_region
      %106 = dma.done [#allocation4], 256
    $region29: #{tpu_custom_call.1} parent=1 // pred_fallthru
      _
    %107 = vsyncpa [#allocation3], 1
    %108 = vsyncpa [#allocation6], 1
    %109 = vsyncpa [#allocation4], 1

</llo_original>
